<compile_context>
chip_gen: v6e
topology: v6e:2x2x1
jax: 0.10.0
libtpu: 0.0.40
codegen_flags: <defaults>
</compile_context>

<pallas_src>
import jax
import jax.numpy as jnp
from jax.experimental import pallas as pl
from jax.experimental.pallas import tpu as pltpu

_TARGET_BLOCK_BYTES = 4 << 20   # ~4 MiB per block: stream-copy sweet spot
_MIN_BLOCK_BYTES = 1 << 20      # never shrink below ~1 MiB when balancing grid


def _round_up(a: int, b: int) -> int:
    return ((a + b - 1) // b) * b


def _copy_kernel(x_ref, o_ref):
    # Full-tile, lane-aligned copy; the input block already excludes the tail.
    o_ref[...] = x_ref[...]


def _slice_kernel(x_ref, o_ref):
    # Fallback for tiny L_out (< 128): full-extent last dims, slice in-kernel.
    o_ref[...] = x_ref[:, : o_ref.shape[-1]]


def _pick_row_tile(rows, lane_elems, itemsize, sub_mult, grid_l):
    """Row-block size filling ~_TARGET_BLOCK_BYTES, balanced over `rows`, then
    split further (while blocks stay >= ~1 MiB) so grid_r * grid_l >= 8."""
    if rows < sub_mult:
        return rows, 1                      # full extent: (8,128) rule waived
    per_row = lane_elems * itemsize
    Rt = max(sub_mult, (_TARGET_BLOCK_BYTES // per_row) // sub_mult * sub_mult)
    Rt = _round_up(pl.cdiv(rows, pl.cdiv(rows, Rt)), sub_mult)   # balance
    grid_r = pl.cdiv(rows, Rt)
    for want in (2, 4, 8):                  # keep both v7x TensorCores busy
        if grid_r * grid_l >= want:
            continue
        Rt_new = _round_up(pl.cdiv(rows, pl.cdiv(want, grid_l)), sub_mult)
        if Rt_new >= sub_mult and Rt_new * per_row >= _MIN_BLOCK_BYTES:
            Rt, grid_r = Rt_new, pl.cdiv(rows, Rt_new)
    return Rt, grid_r


def _vmem_limit(block_bytes_in, block_bytes_out):
    # Double-buffered input + output blocks plus headroom for internal scratch.
    need = 2 * (block_bytes_in + block_bytes_out) + (8 << 20)
    return int(min(64 << 20, max(32 << 20, need)))


def chomp1d(x: jax.Array, chomp_size: int) -> jax.Array:
    """x: (N, C, L) -> (N, C, L - chomp_size); equals x[:, :, :-chomp_size]."""
    N, C, L = x.shape
    if chomp_size == 0:
        # Identity under JAX immutability (PyTorch's .contiguous() copy is moot).
        return x
    assert 0 < chomp_size < L, "chomp_size must be in (0, L)"
    L_out = L - chomp_size

    rows = N * C
    x2d = x.reshape(rows, L)                      # contiguous reshape, free

    itemsize = jnp.dtype(x.dtype).itemsize
    sub_mult = max(8, 32 // itemsize)             # 8 f32 / 16 bf16 / 32 int8

    if L_out >= 128:
        # Lane (time) tile: 128-multiple, balanced; single block whenever the
        # whole kept prefix fits the byte budget (contiguous writeback DMA).
        lane_budget = max(
            128, (_TARGET_BLOCK_BYTES // (sub_mult * itemsize)) // 128 * 128)
        if L_out <= lane_budget:
            Lt = _round_up(L_out, 128)
        else:
            Lt = _round_up(pl.cdiv(L_out, pl.cdiv(L_out, lane_budget)), 128)
        grid_l = pl.cdiv(L_out, Lt)
        Rt, grid_r = _pick_row_tile(rows, Lt, itemsize, sub_mult, grid_l)
        blk = Rt * Lt * itemsize
        out2d = pl.pallas_call(
            _copy_kernel,
            out_shape=jax.ShapeDtypeStruct((rows, L_out), x.dtype),
            grid_spec=pltpu.PrefetchScalarGridSpec(
                num_scalar_prefetch=0,
                grid=(grid_r, grid_l),
                in_specs=[pl.BlockSpec((Rt, Lt), lambda i, j: (i, j))],
                out_specs=pl.BlockSpec((Rt, Lt), lambda i, j: (i, j)),
            ),
            compiler_params=pltpu.CompilerParams(
                dimension_semantics=("parallel", "parallel"),
                vmem_limit_bytes=_vmem_limit(blk, blk),
            ),
        )(x2d)
    else:
        # Tiny time axis: full last-dim extents ((8,128) rule waived), slice
        # inside the kernel. The chomped tail is still read on this path.
        # TODO(synk): if chomp_size is a large fraction of L, fuse the trim
        # into the consumer kernel instead of paying the extra read bandwidth.
        Rt, grid_r = _pick_row_tile(rows, L, itemsize, sub_mult, 1)
        out2d = pl.pallas_call(
            _slice_kernel,
            out_shape=jax.ShapeDtypeStruct((rows, L_out), x.dtype),
            grid_spec=pltpu.PrefetchScalarGridSpec(
                num_scalar_prefetch=0,
                grid=(grid_r,),
                in_specs=[pl.BlockSpec((Rt, L), lambda i: (i, 0))],
                out_specs=pl.BlockSpec((Rt, L_out), lambda i: (i, 0)),
            ),
            compiler_params=pltpu.CompilerParams(
                dimension_semantics=("parallel",),
                vmem_limit_bytes=_vmem_limit(Rt * L * itemsize,
                                             Rt * L_out * itemsize),
            ),
        )(x2d)

    return out2d.reshape(N, C, L_out)


if __name__ == "__main__":
    key = jax.random.PRNGKey(0)
    k1, k2 = jax.random.split(key)

    # Small, module-consistent shape (exercises the L_out < 128 fallback path).
    N, C, L = 2, 4, 16
    chomp = 3  # = (kernel_size - 1) * dilation in a TCN block
    x = jax.random.normal(k1, (N, C, L), dtype=jnp.float32)
    y = jax.block_until_ready(chomp1d(x, chomp))
    assert y.shape == (N, C, L - chomp)
    assert jnp.array_equal(y, x[:, :, :-chomp])

    # Shape exercising the lane-aligned tiled path (single balanced lane block,
    # input block extends past L_out into the chomped region -> masked write).
    N2, C2, L2, chomp2 = 2, 16, 203, 3
    x2 = jax.random.normal(k2, (N2, C2, L2), dtype=jnp.float32)
    y2 = jax.block_until_ready(chomp1d(x2, chomp2))
    assert y2.shape == (N2, C2, L2 - chomp2)
    assert jnp.array_equal(y2, x2[:, :, :-chomp2])

    print("KERNEL_OK")
</pallas_src>

<mosaic_0001>
module attributes {stable_mosaic.version = 11 : i64} {
  func.func @_slice_kernel(%arg0: i32, %arg1: memref<8x16xf32, #tpu.memory_space<vmem>>, %arg2: memref<8x13xf32, #tpu.memory_space<vmem>>) attributes {dimension_semantics = [#tpu.dimension_semantics<parallel>], iteration_bounds = array<i64: 1>, scalar_prefetch = 0 : i64, scratch_operands = 0 : i64, tpu.core_type = #tpu.core_type<tc>, window_params = [{transform_indices = @transform_0, window_bounds = array<i64: 8, 16>}, {transform_indices = @transform_1, window_bounds = array<i64: 8, 13>}]} {
    %c0 = arith.constant 0 : index
    %c0_0 = arith.constant 0 : index
    %0 = vector.load %arg1[%c0, %c0_0] : memref<8x16xf32, #tpu.memory_space<vmem>>, vector<8x13xf32>
    %c0_1 = arith.constant 0 : index
    %c0_2 = arith.constant 0 : index
    %1 = vector.load %arg2[%c0_1, %c0_2] : memref<8x13xf32, #tpu.memory_space<vmem>>, vector<8x13xf32>
    tpu.vector_store %arg2[%c0_1, %c0_2], %0 {strides = array<i32>} : memref<8x13xf32, #tpu.memory_space<vmem>>, vector<8x13xf32>,
    return
  }
  func.func @transform_0(%arg0: i32) -> (i32, i32) {
    %c0_i32 = arith.constant 0 : i32
    %c0_i32_0 = arith.constant 0 : i32
    return %arg0, %c0_i32 : i32, i32
  }
  func.func @transform_1(%arg0: i32) -> (i32, i32) {
    %c0_i32 = arith.constant 0 : i32
    %c0_i32_0 = arith.constant 0 : i32
    return %arg0, %c0_i32 : i32, i32
  }
}

</mosaic_0001>

<llo_original>
// kernel: tpu_custom_call.1
$region0: #{tpu_custom_call.1}
  #allocation0 [shape = 'u32[]', space=smem, size = 0x4, offset = 0x4, fixed_abs, tag = 'smem constant byte address 0x4 - core index']
  #allocation1 [shape = 'u32[144,128]{1,0:T(1,128)}', space=vmem, size = 0x12000, scoped, tag = 'internal scratch']
  %s0 = inlined_call_operand.hbm [shape: f32[8,16], index: 0, kind: input, shape index: {}]
  %s1 = inlined_call_operand.hbm [shape: f32[8,13], index: 1, kind: output, shape index: {}]
  %s2 = sld [smem:[#allocation0]]
  $region18: #{tpu_custom_call.1} parent=0
    _
  %s4 = ssub.s32 1, %s2
  %s5 = scalar_select 0, %s4, %s2
  $region1: #{tpu_custom_call.1} parent=0
    #allocation2 [shape = 'u8[4096]{0}', space=vmem, size = 0x1000, scoped, tag = 'input window, operand 0, single buffered']
    #allocation3 [shape = 's32[1]{0}', space=sflag, size = 0x4, scoped, tag = 'scoped memory for tpu_custom_call.1']
    #allocation4 [shape = 's32[1]{0}', space=sflag, size = 0x4, scoped, tag = 'scoped memory for tpu_custom_call.1']
    #allocation5 [shape = 'u8[4096]{0}', space=vmem, size = 0x1000, scoped, tag = 'output window, operand 0, single buffered']
    %6 = vsyncpa [#allocation3], 0
    %7 = vsyncpa [#allocation4], 0
    // Predicated region
    $region2: #{tpu_custom_call.1} parent=1 // pred_check
      _
    $region3: #{tpu_custom_call.1} parent=1 // pred_check_branch
      %9 = sbr.rel (0) target = $region5
    $region4: #{tpu_custom_call.1} parent=1 // pred_region
      %s11 = ssub.s32 128, 128
      %12 = vsyncadd [#allocation3], %s11
      %s14 = sshll.u32 [#allocation2], 4
      %s15 = int_to_ptr.vmem [resolvable:$true] %s14
      %17 = dma.hbm_to_vmem [thread:$0]  %s0, 128, %s15, [#allocation3]
    $region5: #{tpu_custom_call.1} parent=1 // pred_fallthru
      _
    // Predicated region
    $region6: #{tpu_custom_call.1} parent=1 // pred_check
      _
    $region7: #{tpu_custom_call.1} parent=1 // pred_check_branch
      %19 = sbr.rel (0) target = $region9
    $region8: #{tpu_custom_call.1} parent=1 // pred_region
      %20 = dma.done [#allocation3], 128
    $region9: #{tpu_custom_call.1} parent=1 // pred_fallthru
      _
    %v21 = vld [vmem:[#allocation2] sm:$0xff]
    %vm22 = vcmask 105472
    %23 = vst.msk [vmem:[#allocation5] sm:$0xff] %vm22, %v21
    // Predicated region
    $region10: #{tpu_custom_call.1} parent=1 // pred_check
      _
    $region11: #{tpu_custom_call.1} parent=1 // pred_check_branch
      %25 = sbr.rel (0) target = $region13
    $region12: #{tpu_custom_call.1} parent=1 // pred_region
      %s27 = ssub.s32 128, 128
      %28 = vsyncadd [#allocation4], %s27
      %s30 = sshll.u32 [#allocation5], 4
      %s31 = int_to_ptr.vmem [resolvable:$true] %s30
      %33 = dma.vmem_to_hbm [thread:$0]  %s31, 128, %s1, [#allocation4]
    $region13: #{tpu_custom_call.1} parent=1 // pred_fallthru
      _
    // Predicated region
    $region14: #{tpu_custom_call.1} parent=1 // pred_check
      _
    $region15: #{tpu_custom_call.1} parent=1 // pred_check_branch
      %35 = sbr.rel (0) target = $region17
    $region16: #{tpu_custom_call.1} parent=1 // pred_region
      %36 = dma.done [#allocation4], 128
    $region17: #{tpu_custom_call.1} parent=1 // pred_fallthru
      _
    %37 = vsyncpa [#allocation3], 1
    %38 = vsyncpa [#allocation4], 1

</llo_original>
